<compile_context>
chip_gen: v7x
topology: tpu7x:2x2x1
jax: 0.10.0
libtpu: 0.0.40
codegen_flags: <defaults>
</compile_context>

<pallas_src>
import functools

import jax
import jax.numpy as jnp
from jax.experimental import pallas as pl
from jax.experimental.pallas import tpu as pltpu


def _contrastive_loss_kernel(p1_ref, p2_ref, loss_ref, reps_ref, *,
                             inv_temperature, batch_size, tile_rows,
                             matmul_dtype):
    B = batch_size
    Tb = tile_rows
    inv_t = inv_temperature            # Python float, hoisted (no per-element divide)

    h = pl.program_id(0)               # which half: 0 -> rows of z_i, 1 -> rows of z_j
    b = pl.program_id(1)               # row-block index inside the half
    nb = pl.num_programs(1)

    # ---- one-time init: L2-normalize both projections (in f32) into the
    #      resident VMEM scratch, zero the scalar accumulator.
    @pl.when((h == 0) & (b == 0))
    def _():
        p1 = p1_ref[...].astype(jnp.float32)
        p2 = p2_ref[...].astype(jnp.float32)
        n1 = jnp.maximum(jnp.sqrt(jnp.sum(p1 * p1, axis=1, keepdims=True)), 1e-12)
        n2 = jnp.maximum(jnp.sqrt(jnp.sum(p2 * p2, axis=1, keepdims=True)), 1e-12)
        reps_ref[0] = p1 / n1          # z_i
        reps_ref[1] = p2 / n2          # z_j
        loss_ref[...] = jnp.zeros_like(loss_ref)

    start = pl.multiple_of(b * Tb, Tb)
    q_tile = reps_ref[h, pl.ds(start, Tb), :]         # [Tb, D] query rows
    pos_tile = reps_ref[1 - h, pl.ds(start, Tb), :]   # [Tb, D] positive partners
    keys_same = reps_ref[h]                           # [B, D]  same-half keys
    keys_cross = reps_ref[1 - h]                      # [B, D]  other-half keys

    # A @ B.T without materializing a transpose: contract on axis 1 of both.
    nt_dims = (((1,), (1,)), ((), ()))
    qm = q_tile.astype(matmul_dtype)
    sim_same = jax.lax.dot_general(qm, keys_same.astype(matmul_dtype), nt_dims,
                                   preferred_element_type=jnp.float32)   # [Tb, B]
    sim_cross = jax.lax.dot_general(qm, keys_cross.astype(matmul_dtype), nt_dims,
                                    preferred_element_type=jnp.float32)  # [Tb, B]

    # Stabilized exp: sim <= 1 so (sim - 1) * inv_t <= 0 -> never overflows.
    e_same = jnp.exp((sim_same - 1.0) * inv_t)
    e_cross = jnp.exp((sim_cross - 1.0) * inv_t)

    # Remove the self-similarity term exactly: in the same-half block the self
    # column equals this row's global index inside the half.
    cols = jax.lax.broadcasted_iota(jnp.int32, (Tb, B), 1)
    rows = jax.lax.broadcasted_iota(jnp.int32, (Tb, B), 0) + start
    e_same = jnp.where(cols == rows, 0.0, e_same)

    denom_scaled = (jnp.sum(e_same, axis=1, keepdims=True) +
                    jnp.sum(e_cross, axis=1, keepdims=True))              # [Tb, 1]

    # positives as a plain row-wise dot product (no mask, no extra matmul).
    positives = jnp.sum(q_tile * pos_tile, axis=1, keepdims=True)         # [Tb, 1]

    # per-row loss = log(sum_{c != r} exp(sim_rc / T)) - pos_r / T
    #              = (1 - pos_r) * (1/T) + log(denom_scaled_r)
    tile_loss = jnp.sum((1.0 - positives) * inv_t + jnp.log(denom_scaled))
    loss_ref[...] += tile_loss

    @pl.when((h == 1) & (b == nb - 1))
    def _():
        loss_ref[...] = loss_ref[...] * (1.0 / (2.0 * B))


def contrastive_loss(proj_1, proj_2, temperature=0.5, *, tile_rows=None,
                     matmul_dtype=jnp.float32):
    """InfoNCE / NT-Xent loss matching the PyTorch ContrastiveLoss module.

    proj_1, proj_2: [batch, embedding_dim].
    matmul_dtype: set to jnp.bfloat16 on v6e/v7x at large batch for ~2x MXU
    throughput (normalization always runs in f32).
    """
    B, D = proj_1.shape
    assert proj_2.shape == (B, D)

    # Lane-align the embedding dim; zero columns change neither norms nor dots.
    D_pad = ((D + 127) // 128) * 128
    if D_pad != D:
        pad = ((0, 0), (0, D_pad - D))
        proj_1 = jnp.pad(proj_1, pad)
        proj_2 = jnp.pad(proj_2, pad)

    if tile_rows is None:
        tile_rows = B
        for cand in (256, 128, 64, 32, 16, 8):   # largest divisor <= 256, mult of 8
            if B % cand == 0:
                tile_rows = cand
                break
    assert B % tile_rows == 0
    nb = B // tile_rows

    kernel = functools.partial(
        _contrastive_loss_kernel,
        inv_temperature=1.0 / float(temperature),
        batch_size=B,
        tile_rows=tile_rows,
        matmul_dtype=matmul_dtype,
    )

    # Explicit VMEM budget: inputs + (2,B,D) reps scratch + per-tile sim/exp
    # intermediates, plus slack.
    vmem_bytes = 4 * (6 * B * D_pad + 8 * tile_rows * B) + (2 << 20)
    vmem_bytes = int(min(max(vmem_bytes, 16 << 20), 128 << 20))

    out = pl.pallas_call(
        kernel,
        out_shape=jax.ShapeDtypeStruct((1, 1), jnp.float32),
        grid_spec=pltpu.PrefetchScalarGridSpec(
            num_scalar_prefetch=0,
            grid=(2, nb),
            in_specs=[
                pl.BlockSpec((B, D_pad), lambda h, b: (0, 0)),
                pl.BlockSpec((B, D_pad), lambda h, b: (0, 0)),
            ],
            out_specs=pl.BlockSpec((1, 1), lambda h, b: (0, 0)),
            scratch_shapes=[pltpu.VMEM((2, B, D_pad), jnp.float32)],
        ),
        compiler_params=pltpu.CompilerParams(
            # A single resident scalar accumulator is revisited every step, so
            # both axes must be sequential.  (For v7x 2-TC sharding one would
            # emit per-tile partial sums to a [num_tiles] output and mark the
            # row axis "parallel", reducing in the wrapper.)
            dimension_semantics=("arbitrary", "arbitrary"),
            vmem_limit_bytes=vmem_bytes,
        ),
    )(proj_1, proj_2)
    return out[0, 0]


def _reference_loss(proj_1, proj_2, temperature=0.5):
    # Pure-JAX reference mirroring the PyTorch module.
    B = proj_1.shape[0]
    z_i = proj_1 / jnp.maximum(jnp.linalg.norm(proj_1, axis=1, keepdims=True), 1e-12)
    z_j = proj_2 / jnp.maximum(jnp.linalg.norm(proj_2, axis=1, keepdims=True), 1e-12)
    reps = jnp.concatenate([z_i, z_j], axis=0)
    sim = reps @ reps.T
    pos = jnp.sum(z_i * z_j, axis=1)                 # == diag(sim, +B) == diag(sim, -B)
    positives = jnp.concatenate([pos, pos], axis=0)
    mask = 1.0 - jnp.eye(2 * B, dtype=jnp.float32)
    nominator = jnp.exp(positives / temperature)
    denominator = mask * jnp.exp(sim / temperature)
    all_losses = -jnp.log(nominator / jnp.sum(denominator, axis=1))
    return jnp.sum(all_losses) / (2 * B)


if __name__ == "__main__":
    key = jax.random.PRNGKey(0)
    k1, k2, k3, k4 = jax.random.split(key, 4)

    # Small shape consistent with the module: [batch, embedding_dim].
    batch, embed_dim = 4, 32
    proj_1 = jax.random.normal(k1, (batch, embed_dim), dtype=jnp.float32)
    proj_2 = jax.random.normal(k2, (batch, embed_dim), dtype=jnp.float32)

    loss = jax.block_until_ready(contrastive_loss(proj_1, proj_2, temperature=0.5))
    ref = jax.block_until_ready(_reference_loss(proj_1, proj_2, temperature=0.5))
    assert jnp.allclose(loss, ref, atol=1e-5, rtol=1e-4), (loss, ref)

    # Second check exercising the row-tiled grid path (2 row blocks per half).
    q1 = jax.random.normal(k3, (16, 64), dtype=jnp.float32)
    q2 = jax.random.normal(k4, (16, 64), dtype=jnp.float32)
    loss2 = jax.block_until_ready(
        contrastive_loss(q1, q2, temperature=0.5, tile_rows=8))
    ref2 = jax.block_until_ready(_reference_loss(q1, q2, temperature=0.5))
    assert jnp.allclose(loss2, ref2, atol=1e-5, rtol=1e-4), (loss2, ref2)

    print("KERNEL_OK")
</pallas_src>

<mosaic_0001>
module attributes {stable_mosaic.version = 11 : i64} {
  func.func @_contrastive_loss_kernel(%arg0: i32, %arg1: i32, %arg2: memref<4x128xf32, #tpu.memory_space<vmem>>, %arg3: memref<4x128xf32, #tpu.memory_space<vmem>>, %arg4: memref<1x1xf32, #tpu.memory_space<vmem>>, %arg5: memref<2x4x128xf32, #tpu.memory_space<vmem>>) attributes {dimension_semantics = [#tpu.dimension_semantics<arbitrary>, #tpu.dimension_semantics<arbitrary>], iteration_bounds = array<i64: 2, 1>, scalar_prefetch = 0 : i64, scratch_operands = 1 : i64, tpu.core_type = #tpu.core_type<tc>, window_params = [{pipeline_mode = #tpu.pipeline_mode<synchronous>, transform_indices = @transform_0, window_bounds = array<i64: 4, 128>}, {pipeline_mode = #tpu.pipeline_mode<synchronous>, transform_indices = @transform_1, window_bounds = array<i64: 4, 128>}, {pipeline_mode = #tpu.pipeline_mode<synchronous>, transform_indices = @transform_2, window_bounds = array<i64: 1, 1>}]} {
    %c0_i32 = arith.constant 0 : i32
    %0 = arith.cmpi eq, %arg0, %c0_i32 : i32
    %c0_i32_0 = arith.constant 0 : i32
    %1 = arith.cmpi eq, %arg1, %c0_i32_0 : i32
    %2 = arith.andi %0, %1 : i1
    %3 = arith.extui %2 : i1 to i32
    %c0_i32_1 = arith.constant 0 : i32
    %4 = arith.cmpi ne, %3, %c0_i32_1 : i32
    scf.if %4 {
      %c0_27 = arith.constant 0 : index
      %c0_28 = arith.constant 0 : index
      %69 = vector.load %arg2[%c0_27, %c0_28] : memref<4x128xf32, #tpu.memory_space<vmem>>, vector<4x128xf32>
      %c0_29 = arith.constant 0 : index
      %c0_30 = arith.constant 0 : index
      %70 = vector.load %arg3[%c0_29, %c0_30] : memref<4x128xf32, #tpu.memory_space<vmem>>, vector<4x128xf32>
      %71 = arith.mulf %69, %69 : vector<4x128xf32>
      %cst_31 = arith.constant dense<0.000000e+00> : vector<4xf32>
      %72 = vector.multi_reduction <add>, %71, %cst_31 [1] : vector<4x128xf32> to vector<4xf32>
      %73 = vector.shape_cast %72 : vector<4xf32> to vector<4x1xf32>
      %74 = math.sqrt %73 : vector<4x1xf32>
      %cst_32 = arith.constant 9.99999996E-13 : f32
      %75 = vector.broadcast %cst_32 : f32 to vector<4x1xf32>
      %76 = arith.maximumf %74, %75 : vector<4x1xf32>
      %77 = arith.mulf %70, %70 : vector<4x128xf32>
      %cst_33 = arith.constant dense<0.000000e+00> : vector<4xf32>
      %78 = vector.multi_reduction <add>, %77, %cst_33 [1] : vector<4x128xf32> to vector<4xf32>
      %79 = vector.shape_cast %78 : vector<4xf32> to vector<4x1xf32>
      %80 = math.sqrt %79 : vector<4x1xf32>
      %cst_34 = arith.constant 9.99999996E-13 : f32
      %81 = vector.broadcast %cst_34 : f32 to vector<4x1xf32>
      %82 = arith.maximumf %80, %81 : vector<4x1xf32>
      %83 = vector.broadcast %76 : vector<4x1xf32> to vector<4x128xf32>
      %84 = arith.divf %69, %83 : vector<4x128xf32>
      %c0_35 = arith.constant 0 : index
      %c0_36 = arith.constant 0 : index
      %c0_37 = arith.constant 0 : index
      %85 = vector.load %arg5[%c0_35, %c0_36, %c0_37] : memref<2x4x128xf32, #tpu.memory_space<vmem>>, vector<1x4x128xf32>
      %86 = vector.shape_cast %85 : vector<1x4x128xf32> to vector<4x128xf32>
      %87 = vector.shape_cast %84 : vector<4x128xf32> to vector<1x4x128xf32>
      tpu.vector_store %arg5[%c0_35, %c0_36, %c0_37], %87 {strides = array<i32>} : memref<2x4x128xf32, #tpu.memory_space<vmem>>, vector<1x4x128xf32>,
      %88 = vector.broadcast %82 : vector<4x1xf32> to vector<4x128xf32>
      %89 = arith.divf %70, %88 : vector<4x128xf32>
      %c1 = arith.constant 1 : index
      %c0_38 = arith.constant 0 : index
      %c0_39 = arith.constant 0 : index
      %90 = vector.load %arg5[%c1, %c0_38, %c0_39] : memref<2x4x128xf32, #tpu.memory_space<vmem>>, vector<1x4x128xf32>
      %91 = vector.shape_cast %90 : vector<1x4x128xf32> to vector<4x128xf32>
      %92 = vector.shape_cast %89 : vector<4x128xf32> to vector<1x4x128xf32>
      tpu.vector_store %arg5[%c1, %c0_38, %c0_39], %92 {strides = array<i32>} : memref<2x4x128xf32, #tpu.memory_space<vmem>>, vector<1x4x128xf32>,
      %cst_40 = arith.constant 0.000000e+00 : f32
      %93 = vector.broadcast %cst_40 : f32 to vector<1x1xf32>
      %c0_41 = arith.constant 0 : index
      %c0_42 = arith.constant 0 : index
      %94 = vector.load %arg4[%c0_41, %c0_42] : memref<1x1xf32, #tpu.memory_space<vmem>>, vector<1x1xf32>
      tpu.vector_store %arg4[%c0_41, %c0_42], %93 {strides = array<i32>} : memref<1x1xf32, #tpu.memory_space<vmem>>, vector<1x1xf32>,
    } else {
    }
    %c4_i32 = arith.constant 4 : i32
    %5 = arith.muli %arg1, %c4_i32 : i32
    %6 = tpu.assume_multiple %5, 4 : i32
    %7 = arith.index_cast %arg0 : i32 to index
    %8 = arith.index_cast %6 : i32 to index
    %c0 = arith.constant 0 : index
    %9 = vector.load %arg5[%7, %8, %c0] : memref<2x4x128xf32, #tpu.memory_space<vmem>>, vector<1x4x128xf32>
    %10 = vector.shape_cast %9 : vector<1x4x128xf32> to vector<4x128xf32>
    %c1_i32 = arith.constant 1 : i32
    %11 = arith.subi %c1_i32, %arg0 : i32
    %12 = arith.index_cast %11 : i32 to index
    %13 = arith.index_cast %6 : i32 to index
    %c0_2 = arith.constant 0 : index
    %14 = vector.load %arg5[%12, %13, %c0_2] : memref<2x4x128xf32, #tpu.memory_space<vmem>>, vector<1x4x128xf32>
    %15 = vector.shape_cast %14 : vector<1x4x128xf32> to vector<4x128xf32>
    %16 = arith.index_cast %arg0 : i32 to index
    %c0_3 = arith.constant 0 : index
    %c0_4 = arith.constant 0 : index
    %17 = vector.load %arg5[%16, %c0_3, %c0_4] : memref<2x4x128xf32, #tpu.memory_space<vmem>>, vector<1x4x128xf32>
    %18 = vector.shape_cast %17 : vector<1x4x128xf32> to vector<4x128xf32>
    %c1_i32_5 = arith.constant 1 : i32
    %19 = arith.subi %c1_i32_5, %arg0 : i32
    %20 = arith.index_cast %19 : i32 to index
    %c0_6 = arith.constant 0 : index
    %c0_7 = arith.constant 0 : index
    %21 = vector.load %arg5[%20, %c0_6, %c0_7] : memref<2x4x128xf32, #tpu.memory_space<vmem>>, vector<1x4x128xf32>
    %22 = vector.shape_cast %21 : vector<1x4x128xf32> to vector<4x128xf32>
    %cst = arith.constant dense<0.000000e+00> : vector<4x4xf32>
    %23 = tpu.matmul %10, %18, %cst {dimension_numbers = #tpu.dot_dimension_numbers<[1], [1], [0], [0], [0, 0, 1, 0], [], []>} : vector<4x128xf32>, vector<4x128xf32>, vector<4x4xf32> -> vector<4x4xf32>
    %cst_8 = arith.constant dense<0.000000e+00> : vector<4x4xf32>
    %24 = tpu.matmul %10, %22, %cst_8 {dimension_numbers = #tpu.dot_dimension_numbers<[1], [1], [0], [0], [0, 0, 1, 0], [], []>} : vector<4x128xf32>, vector<4x128xf32>, vector<4x4xf32> -> vector<4x4xf32>
    %cst_9 = arith.constant 1.000000e+00 : f32
    %25 = vector.broadcast %cst_9 : f32 to vector<4x4xf32>
    %26 = arith.subf %23, %25 : vector<4x4xf32>
    %cst_10 = arith.constant 2.000000e+00 : f32
    %27 = vector.broadcast %cst_10 : f32 to vector<4x4xf32>
    %28 = arith.mulf %26, %27 : vector<4x4xf32>
    %29 = math.exp %28 : vector<4x4xf32>
    %cst_11 = arith.constant 1.000000e+00 : f32
    %30 = vector.broadcast %cst_11 : f32 to vector<4x4xf32>
    %31 = arith.subf %24, %30 : vector<4x4xf32>
    %cst_12 = arith.constant 2.000000e+00 : f32
    %32 = vector.broadcast %cst_12 : f32 to vector<4x4xf32>
    %33 = arith.mulf %31, %32 : vector<4x4xf32>
    %34 = math.exp %33 : vector<4x4xf32>
    %35 = tpu.iota {dimensions = array<i32: 1>} : vector<4x4xi32>
    %36 = tpu.iota {dimensions = array<i32: 0>} : vector<4x4xi32>
    %37 = vector.broadcast %6 : i32 to vector<4x4xi32>
    %38 = arith.addi %36, %37 : vector<4x4xi32>
    %39 = arith.cmpi eq, %35, %38 : vector<4x4xi32>
    %cst_13 = arith.constant 0.000000e+00 : f32
    %40 = vector.broadcast %cst_13 : f32 to vector<4x4xf32>
    %41 = arith.select %39, %40, %29 : vector<4x4xi1>, vector<4x4xf32>
    %cst_14 = arith.constant dense<0.000000e+00> : vector<4xf32>
    %42 = vector.multi_reduction <add>, %41, %cst_14 [1] : vector<4x4xf32> to vector<4xf32>
    %43 = vector.shape_cast %42 : vector<4xf32> to vector<4x1xf32>
    %cst_15 = arith.constant dense<0.000000e+00> : vector<4xf32>
    %44 = vector.multi_reduction <add>, %34, %cst_15 [1] : vector<4x4xf32> to vector<4xf32>
    %45 = vector.shape_cast %44 : vector<4xf32> to vector<4x1xf32>
    %46 = arith.addf %43, %45 : vector<4x1xf32>
    %47 = arith.mulf %10, %15 : vector<4x128xf32>
    %cst_16 = arith.constant dense<0.000000e+00> : vector<4xf32>
    %48 = vector.multi_reduction <add>, %47, %cst_16 [1] : vector<4x128xf32> to vector<4xf32>
    %49 = vector.shape_cast %48 : vector<4xf32> to vector<4x1xf32>
    %cst_17 = arith.constant 1.000000e+00 : f32
    %50 = vector.broadcast %cst_17 : f32 to vector<4x1xf32>
    %51 = arith.subf %50, %49 : vector<4x1xf32>
    %cst_18 = arith.constant 2.000000e+00 : f32
    %52 = vector.broadcast %cst_18 : f32 to vector<4x1xf32>
    %53 = arith.mulf %51, %52 : vector<4x1xf32>
    %54 = math.log %46 : vector<4x1xf32>
    %55 = arith.addf %53, %54 : vector<4x1xf32>
    %56 = vector.shape_cast %55 : vector<4x1xf32> to vector<1x4x1xf32>
    %cst_19 = arith.constant dense<0.000000e+00> : vector<1xf32>
    %57 = vector.multi_reduction <add>, %56, %cst_19 [1, 2] : vector<1x4x1xf32> to vector<1xf32>
    %58 = vector.shape_cast %57 : vector<1xf32> to vector<1x1x1xf32>
    %59 = vector.extract %58[0, 0, 0] : f32 from vector<1x1x1xf32>
    %c0_20 = arith.constant 0 : index
    %c0_21 = arith.constant 0 : index
    %60 = vector.load %arg4[%c0_20, %c0_21] : memref<1x1xf32, #tpu.memory_space<vmem>>, vector<1x1xf32>
    %61 = vector.broadcast %59 : f32 to vector<1x1xf32>
    %62 = arith.addf %60, %61 : vector<1x1xf32>
    %c0_22 = arith.constant 0 : index
    %c0_23 = arith.constant 0 : index
    %63 = vector.load %arg4[%c0_22, %c0_23] : memref<1x1xf32, #tpu.memory_space<vmem>>, vector<1x1xf32>
    tpu.vector_store %arg4[%c0_22, %c0_23], %62 {strides = array<i32>} : memref<1x1xf32, #tpu.memory_space<vmem>>, vector<1x1xf32>,
    %c1_i32_24 = arith.constant 1 : i32
    %64 = arith.cmpi eq, %arg0, %c1_i32_24 : i32
    %c0_i32_25 = arith.constant 0 : i32
    %65 = arith.cmpi eq, %arg1, %c0_i32_25 : i32
    %66 = arith.andi %64, %65 : i1
    %67 = arith.extui %66 : i1 to i32
    %c0_i32_26 = arith.constant 0 : i32
    %68 = arith.cmpi ne, %67, %c0_i32_26 : i32
    scf.if %68 {
      %c0_27 = arith.constant 0 : index
      %c0_28 = arith.constant 0 : index
      %69 = vector.load %arg4[%c0_27, %c0_28] : memref<1x1xf32, #tpu.memory_space<vmem>>, vector<1x1xf32>
      %cst_29 = arith.constant 1.250000e-01 : f32
      %70 = vector.broadcast %cst_29 : f32 to vector<1x1xf32>
      %71 = arith.mulf %69, %70 : vector<1x1xf32>
      %c0_30 = arith.constant 0 : index
      %c0_31 = arith.constant 0 : index
      %72 = vector.load %arg4[%c0_30, %c0_31] : memref<1x1xf32, #tpu.memory_space<vmem>>, vector<1x1xf32>
      tpu.vector_store %arg4[%c0_30, %c0_31], %71 {strides = array<i32>} : memref<1x1xf32, #tpu.memory_space<vmem>>, vector<1x1xf32>,
    } else {
    }
    return
  }
  func.func @transform_0(%arg0: i32, %arg1: i32) -> (i32, i32) {
    %c0_i32 = arith.constant 0 : i32
    %c0_i32_0 = arith.constant 0 : i32
    %c0_i32_1 = arith.constant 0 : i32
    return %c0_i32, %c0_i32_0 : i32, i32
  }
  func.func @transform_1(%arg0: i32, %arg1: i32) -> (i32, i32) {
    %c0_i32 = arith.constant 0 : i32
    %c0_i32_0 = arith.constant 0 : i32
    %c0_i32_1 = arith.constant 0 : i32
    return %c0_i32, %c0_i32_0 : i32, i32
  }
  func.func @transform_2(%arg0: i32, %arg1: i32) -> (i32, i32) {
    %c0_i32 = arith.constant 0 : i32
    %c0_i32_0 = arith.constant 0 : i32
    %c0_i32_1 = arith.constant 0 : i32
    return %c0_i32, %c0_i32_0 : i32, i32
  }
}

</mosaic_0001>

<llo_original>
// kernel: tpu_custom_call.1
$region0: #{tpu_custom_call.1}
  #allocation0 [shape = 'u32[]', space=smem, size = 0x4, offset = 0x4, fixed_abs, tag = 'smem constant byte address 0x4 - core index']
  #allocation1 [shape = 'u32[144,128]{1,0:T(1,128)}', space=vmem, size = 0x12000, scoped, tag = 'internal scratch']
  #allocation2 [shape = 'f32[2,4,128]{2,1,0:T(4,128)}', space=vmem, size = 0x1000, scoped, tag = 'scratch operand']
  %s0 = inlined_call_operand.hbm [shape: f32[4,128], index: 0, kind: input, shape index: {}]
  %s1 = inlined_call_operand.hbm [shape: f32[4,128], index: 1, kind: input, shape index: {}]
  %s2 = inlined_call_operand.hbm [shape: f32[1,1], index: 2, kind: output, shape index: {}]
  %s3 = sld [smem:[#allocation0]]
  $region57: #{tpu_custom_call.1} parent=0
    _
  %s5 = ssub.s32 1, %s3
  %s6 = scalar_select 0, %s5, %s3
  $region1: #{tpu_custom_call.1} parent=0
    #allocation3 [shape = 'u8[2048]{0}', space=vmem, size = 0x800, scoped, tag = 'input window, operand 0, single buffered']
    #allocation4 [shape = 's32[2]{0}', space=sflag, size = 0x8, scoped, tag = 'scoped memory for tpu_custom_call.1']
    #allocation5 [shape = 's32[2]{0}', space=sflag, size = 0x8, scoped, tag = 'scoped memory for tpu_custom_call.1']
    #allocation6 [shape = 'u8[2048]{0}', space=vmem, size = 0x800, scoped, tag = 'input window, operand 1, single buffered']
    #allocation7 [shape = 's32[1]{0}', space=sflag, size = 0x4, scoped, tag = 'scoped memory for tpu_custom_call.1']
    #allocation8 [shape = 'u8[512]{0}', space=vmem, size = 0x400, scoped, tag = 'output window, operand 0, single buffered']
    %7 = vsyncpa [#allocation4], 0
    %8 = vsyncpa [#allocation7], 0
    %9 = vsyncpa [#allocation5], 0
    loop: start=0, step=1, limit=4
    $region2: #{tpu_custom_call.1} parent=1 // loop_pre_header
      _
    $region3: #{tpu_custom_call.1} parent=1 // loop_header
      %s11 = sphi 0, %s15
      %p12 = scmp.ge.s32.totalorder %s11, 4
      %s18 = sphi 0, %s30
      %s19 = sphi 0, %s26
      %s20 = sphi 0, %s18
      %s21 = sphi 0, %s19
      %s22 = sphi 0, %s20
      %s23 = sphi 0, %s21
      %s31 = sphi 0, %s31
      %s33 = sphi 0, %s31
      %s34 = sphi 0, %s33
      %s48 = sphi 0, %s34
      %s52 = sphi 0, %s52
      %s54 = sphi 0, %s52
      %s55 = sphi 0, %s54
      %s69 = sphi 0, %s55
      %s73 = sphi 0, %s73
      %s75 = sphi 0, %s73
      %s76 = sphi 0, %s75
      %s90 = sphi 0, %s76
    $region4: #{tpu_custom_call.1} parent=1 // loop_header_branch
      %14 = sbr.rel (%p12) target = $region8
    $region5: #{tpu_custom_call.1} parent=1 // loop_body
      %s16 = ssub.s32 %s11, 1
      %s17 = ssub.s32 %s11, 2
      %s24 = sadd.s32 1, %s19
      %p25 = scmp.ge.s32.totalorder %s24, 1
      %s26 = scalar_select %p25, 0, %s24
      %s27 = sadd.s32 1, %s18
      %s28 = scalar_select %p25, %s27, %s18
      %p29 = scmp.ge.s32.totalorder %s28, 2
      %s30 = scalar_select %p29, 0, %s28
      %s32 = sadd.s32 %s31, 1
      %p35 = scmp.eq.s32.totalorder %s11, 1
      %p36 = scmp.ne.s32.totalorder %s31, %s33
      %p37 = scmp.eq.s32.totalorder %s11, 0
      %p38 = por %p36, %p37
      %p39 = scmp.ne.s32.totalorder %s31, %s33
      %p40 = scmp.eq.s32.totalorder %s16, 1
      %p41 = por %p39, %p40
      %p42 = scmp.ne.s32.totalorder %s33, %s34
      %p43 = scmp.eq.s32.totalorder %s16, 0
      %p44 = por %p42, %p43
      %p45 = scmp.ne.s32.totalorder %s33, %s34
      %p46 = scmp.eq.s32.totalorder %s17, 1
      %p47 = por %p45, %p46
      %p49 = scmp.ne.s32.totalorder %s34, %s48
      %p50 = scmp.eq.s32.totalorder %s17, 0
      %p51 = por %p49, %p50
      %s53 = sadd.s32 %s52, 1
      %p56 = scmp.eq.s32.totalorder %s11, 1
      %p57 = scmp.ne.s32.totalorder %s52, %s54
      %p58 = scmp.eq.s32.totalorder %s11, 0
      %p59 = por %p57, %p58
      %p60 = scmp.ne.s32.totalorder %s52, %s54
      %p61 = scmp.eq.s32.totalorder %s16, 1
      %p62 = por %p60, %p61
      %p63 = scmp.ne.s32.totalorder %s54, %s55
      %p64 = scmp.eq.s32.totalorder %s16, 0
      %p65 = por %p63, %p64
      %p66 = scmp.ne.s32.totalorder %s54, %s55
      %p67 = scmp.eq.s32.totalorder %s17, 1
      %p68 = por %p66, %p67
      %p70 = scmp.ne.s32.totalorder %s55, %s69
      %p71 = scmp.eq.s32.totalorder %s17, 0
      %p72 = por %p70, %p71
      %s74 = sadd.s32 %s73, 1
      %p77 = scmp.eq.s32.totalorder %s11, 1
      %p78 = scmp.ne.s32.totalorder %s73, %s75
      %p79 = scmp.eq.s32.totalorder %s11, 0
      %p80 = por %p78, %p79
      %p81 = scmp.ne.s32.totalorder %s73, %s75
      %p82 = scmp.eq.s32.totalorder %s16, 1
      %p83 = por %p81, %p82
      %p84 = scmp.ne.s32.totalorder %s75, %s76
      %p85 = scmp.eq.s32.totalorder %s16, 0
      %p86 = por %p84, %p85
      %p87 = scmp.ne.s32.totalorder %s75, %s76
      %p88 = scmp.eq.s32.totalorder %s17, 1
      %p89 = por %p87, %p88
      %p91 = scmp.ne.s32.totalorder %s76, %s90
      %p92 = scmp.eq.s32.totalorder %s17, 0
      %p93 = por %p91, %p92
      %p94 = scmp.le.s32.totalorder 1, %s11
      %p95 = scmp.lt.s32.totalorder %s11, 3
      %p96 = pnand %p94, %p95
      %p97 = pneg %p96
      // Predicated region
      $region9: #{tpu_custom_call.1} parent=5 // pred_check
        _
      $region10: #{tpu_custom_call.1} parent=5 // pred_check_branch
        %99 = sbr.rel (%p96) target = $region12
      $region11: #{tpu_custom_call.1} parent=5 // pred_region
        %s100 = ssub.s32 %s11, 1
        // Predicated region
        $region13: #{tpu_custom_call.1} parent=11 // pred_check
          %p101 = pneg %p44
        $region14: #{tpu_custom_call.1} parent=11 // pred_check_branch
          %103 = sbr.rel (%p101) target = $region16
        $region15: #{tpu_custom_call.1} parent=11 // pred_region
          %s105 = ssub.s32 64, 64
          %106 = vsyncadd [#allocation4], %s105
          %s108 = sshll.u32 [#allocation3], 4
          %s109 = int_to_ptr.vmem [resolvable:$true] %s108
          %111 = dma.hbm_to_vmem [thread:$0]  %s0, 64, %s109, [#allocation4]
        $region16: #{tpu_custom_call.1} parent=11 // pred_fallthru
          _
        // Predicated region
        $region17: #{tpu_custom_call.1} parent=11 // pred_check
          %p112 = pneg %p65
        $region18: #{tpu_custom_call.1} parent=11 // pred_check_branch
          %114 = sbr.rel (%p112) target = $region20
        $region19: #{tpu_custom_call.1} parent=11 // pred_region
          %s116 = ssub.s32 64, 64
          %117 = vsyncadd [#allocation7], %s116
          %s119 = sshll.u32 [#allocation6], 4
          %s120 = int_to_ptr.vmem [resolvable:$true] %s119
          %122 = dma.hbm_to_vmem [thread:$0]  %s1, 64, %s120, [#allocation7]
        $region20: #{tpu_custom_call.1} parent=11 // pred_fallthru
          _
      $region12: #{tpu_custom_call.1} parent=5 // pred_fallthru
        _
      %p123 = scmp.lt.s32.totalorder %s11, 2
      // Predicated region
      $region21: #{tpu_custom_call.1} parent=5 // pred_check
        %p124 = pneg %p123
      $region22: #{tpu_custom_call.1} parent=5 // pred_check_branch
        %126 = sbr.rel (%p124) target = $region24
      $region23: #{tpu_custom_call.1} parent=5 // pred_region
        _
      $region24: #{tpu_custom_call.1} parent=5 // pred_fallthru
        _
      %p127 = scmp.le.s32.totalorder 1, %s11
      %p128 = scmp.lt.s32.totalorder %s11, 3
      %p129 = pnand %p127, %p128
      %p130 = pneg %p129
      // Predicated region
      $region25: #{tpu_custom_call.1} parent=5 // pred_check
        _
      $region26: #{tpu_custom_call.1} parent=5 // pred_check_branch
        %132 = sbr.rel (%p129) target = $region28
      $region27: #{tpu_custom_call.1} parent=5 // pred_region
        %s133 = ssub.s32 %s11, 1
        // Predicated region
        $region29: #{tpu_custom_call.1} parent=27 // pred_check
          %p134 = pneg %p44
        $region30: #{tpu_custom_call.1} parent=27 // pred_check_branch
          %136 = sbr.rel (%p134) target = $region32
        $region31: #{tpu_custom_call.1} parent=27 // pred_region
          %137 = dma.done [#allocation4], 64
        $region32: #{tpu_custom_call.1} parent=27 // pred_fallthru
          _
        // Predicated region
        $region33: #{tpu_custom_call.1} parent=27 // pred_check
          %p138 = pneg %p65
        $region34: #{tpu_custom_call.1} parent=27 // pred_check_branch
          %140 = sbr.rel (%p138) target = $region36
        $region35: #{tpu_custom_call.1} parent=27 // pred_region
          %141 = dma.done [#allocation7], 64
        $region36: #{tpu_custom_call.1} parent=27 // pred_fallthru
          _
        %p142 = pneg %p44
        %p143 = pneg %p41
        %p144 = pneg %p65
        %p145 = pneg %p62
        %p146 = pneg %p86
        %p147 = pneg %p83
        %p148 = scmp.eq.s32.totalorder %s20, 0
        %p149 = scmp.eq.s32.totalorder %s21, 0
        %p150 = pnand %p148, %p149
        %p151 = pneg %p150
        // Predicated region
        $region37: #{tpu_custom_call.1} parent=27 // pred_check
          _
        $region38: #{tpu_custom_call.1} parent=27 // pred_check_branch
          %153 = sbr.rel (%p150) target = $region40
        $region39: #{tpu_custom_call.1} parent=27 // pred_region
          %v154 = vld [vmem:[#allocation3] sm:$0xf]
          %v155 = vld [vmem:[#allocation6] sm:$0xf]
          %v156 = vmul.f32 %v154, %v154
          %vm157 = vcmask 1043456
          %v158 = vsel %vm157, %v156, 0.0
          %159 = vadd.xlane.f32.xlu0 %v158
          %v160 = vpop.xlane.xlu0 %159
          %v161 = vrsqrt.pop %v160
          %v162 = vmul.f32 %v160, %v161
          %vm163 = vcmp.eq.f32.partialorder %v160, inf
          %v164 = vsel %vm163, %v160, %v162
          %vm165 = vcmp.eq.f32.partialorder %v160, 0.0
          %v166 = vand.u32 %v160, 2147483648
          %v167 = vsel %vm165, %v166, %v164
          %v168 = vmax.f32 %v167, 1e-12
          %v169 = vmul.f32 %v155, %v155
          %v170 = vsel %vm157, %v169, 0.0
          %171 = vadd.xlane.f32.xlu0 %v170
          %v172 = vpop.xlane.xlu0 %171
          %v173 = vrsqrt.pop %v172
          %v174 = vmul.f32 %v172, %v173
          %vm175 = vcmp.eq.f32.partialorder %v172, inf
          %v176 = vsel %vm175, %v172, %v174
          %vm177 = vcmp.eq.f32.partialorder %v172, 0.0
          %v178 = vand.u32 %v172, 2147483648
          %v179 = vsel %vm177, %v178, %v176
          %v180 = vmax.f32 %v179, 1e-12
          %v181 = vrcp.pop %v168
          %v182 = vmul.f32 %v154, %v181
          %183 = vst [vmem:[#allocation2] sm:$0xf] %v182
          %v184 = vrcp.pop %v180
          %v185 = vmul.f32 %v155, %v184
          %s186 = scalar_lea.vmem [#allocation2], 4
          %187 = vst [vmem:[%s186] sm:$0xf] %v185
          %vm188 = vcmask 0
          %189 = vst.msk [vmem:[#allocation8] sm:$0x1] %vm188, 0.0
        $region40: #{tpu_custom_call.1} parent=27 // pred_fallthru
          _
        %s190 = smul.u32 %s21, 4
        %s191 = smul.u32 %s20, 4
        %s192 = sadd.s32 %s190, %s191
        %s193 = scalar_lea.vmem [#allocation2], %s192
        %v194 = vld [vmem:[%s193] sm:$0xf]
        %s195 = ssub.s32 1, %s20
        %s196 = smul.u32 %s195, 4
        %s197 = sadd.s32 %s190, %s196
        %s198 = scalar_lea.vmem [#allocation2], %s197
        %v199 = vld [vmem:[%s198] sm:$0xf]
        %s200 = scalar_lea.vmem [#allocation2], %s191
        %v201 = vld [vmem:[%s200] sm:$0xf]
        %s202 = scalar_lea.vmem [#allocation2], %s196
        %v203 = vld [vmem:[%s202] sm:$0xf]
        %204 = vmatprep.subr.mxu0 0.0
        %205 = vmatpush1.xpose.msra.mxu0 %v201
        %206 = vmatprep.subr.mxu0 0.0
        %207 = vmatpush1.xpose.msra.mxu0 0.0
        %208 = vmatprep.subr.mxu0 0.0
        %209 = vmatpush1.xpose.msra.mxu0 0.0
        %210 = vmatprep.subr.mxu0 0.0
        %211 = vmatpush1.xpose.msra.mxu0 0.0
        %212 = vmatprep.subr.mxu0 0.0
        %213 = vmatpush1.xpose.msra.mxu0 0.0
        %214 = vmatprep.subr.mxu0 0.0
        %215 = vmatpush1.xpose.msra.mxu0 0.0
        %216 = vmatprep.subr.mxu0 0.0
        %217 = vmatpush1.xpose.msra.mxu0 0.0
        %218 = vmatprep.subr.mxu0 0.0
        %219 = vmatpush1.xpose.msra.mxu0 0.0
        %220 = vmatprep.subr.mxu0 0.0
        %221 = vmatpush1.xpose.msra.mxu0 0.0
        %222 = vmatprep.subr.mxu0 0.0
        %223 = vmatpush1.xpose.msra.mxu0 0.0
        %224 = vmatprep.subr.mxu0 0.0
        %225 = vmatpush1.xpose.msra.mxu0 0.0
        %226 = vmatprep.subr.mxu0 0.0
        %227 = vmatpush1.xpose.msra.mxu0 0.0
        %228 = vmatprep.subr.mxu0 0.0
        %229 = vmatpush1.xpose.msra.mxu0 0.0
        %230 = vmatprep.subr.mxu0 0.0
        %231 = vmatpush1.xpose.msra.mxu0 0.0
        %232 = vmatprep.subr.mxu0 0.0
        %233 = vmatpush1.xpose.msra.mxu0 0.0
        %234 = vmatprep.subr.mxu0 0.0
        %235 = vmatpush1.xpose.msra.mxu0 0.0
        %236 = vmatprep.subr.mxu0 0.0
        %237 = vmatpush1.xpose.msra.mxu0 0.0
        %238 = vmatprep.subr.mxu0 0.0
        %239 = vmatpush1.xpose.msra.mxu0 0.0
        %240 = vmatprep.subr.mxu0 0.0
        %241 = vmatpush1.xpose.msra.mxu0 0.0
        %242 = vmatprep.subr.mxu0 0.0
        %243 = vmatpush1.xpose.msra.mxu0 0.0
        %244 = vmatprep.subr.mxu0 0.0
        %245 = vmatpush1.xpose.msra.mxu0 0.0
        %246 = vmatprep.subr.mxu0 0.0
        %247 = vmatpush1.xpose.msra.mxu0 0.0
        %248 = vmatprep.subr.mxu0 0.0
        %249 = vmatpush1.xpose.msra.mxu0 0.0
        %250 = vmatprep.subr.mxu0 0.0
        %251 = vmatpush1.xpose.msra.mxu0 0.0
        %252 = vmatprep.subr.mxu0 0.0
        %253 = vmatpush1.xpose.msra.mxu0 0.0
        %254 = vmatprep.subr.mxu0 0.0
        %255 = vmatpush1.xpose.msra.mxu0 0.0
        %256 = vmatprep.subr.mxu0 0.0
        %257 = vmatpush1.xpose.msra.mxu0 0.0
        %258 = vmatprep.subr.mxu0 0.0
        %259 = vmatpush1.xpose.msra.mxu0 0.0
        %260 = vmatprep.subr.mxu0 0.0
        %261 = vmatpush1.xpose.msra.mxu0 0.0
        %262 = vmatprep.subr.mxu0 0.0
        %263 = vmatpush1.xpose.msra.mxu0 0.0
        %264 = vmatprep.subr.mxu0 0.0
        %265 = vmatpush1.xpose.msra.mxu0 0.0
        %266 = vmatprep.subr.mxu0 0.0
        %267 = vmatpush1.xpose.msra.mxu0 0.0
        %268 = vmatprep.mubr.f32.mxu0 0.0
        %269 = vmatmul.mubr.f32.gmra.mrb[0].mxu0 %v194
        %v270 = vpop.f32.mrb[0].mxu0
        %v271 = vadd.f32 0.0, %v270
        %v272 = vpop.f32.mrb[0].mxu0
        %273 = vdwg.mxu0
        %274 = vmatprep.subr.mxu0 0.0
        %275 = vmatpush1.xpose.msra.mxu0 %v203
        %276 = vmatprep.subr.mxu0 0.0
        %277 = vmatpush1.xpose.msra.mxu0 0.0
        %278 = vmatprep.subr.mxu0 0.0
        %279 = vmatpush1.xpose.msra.mxu0 0.0
        %280 = vmatprep.subr.mxu0 0.0
        %281 = vmatpush1.xpose.msra.mxu0 0.0
        %282 = vmatprep.subr.mxu0 0.0
        %283 = vmatpush1.xpose.msra.mxu0 0.0
        %284 = vmatprep.subr.mxu0 0.0
        %285 = vmatpush1.xpose.msra.mxu0 0.0
        %286 = vmatprep.subr.mxu0 0.0
        %287 = vmatpush1.xpose.msra.mxu0 0.0
        %288 = vmatprep.subr.mxu0 0.0
        %289 = vmatpush1.xpose.msra.mxu0 0.0
        %290 = vmatprep.subr.mxu0 0.0
        %291 = vmatpush1.xpose.msra.mxu0 0.0
        %292 = vmatprep.subr.mxu0 0.0
        %293 = vmatpush1.xpose.msra.mxu0 0.0
        %294 = vmatprep.subr.mxu0 0.0
        %295 = vmatpush1.xpose.msra.mxu0 0.0
        %296 = vmatprep.subr.mxu0 0.0
        %297 = vmatpush1.xpose.msra.mxu0 0.0
        %298 = vmatprep.subr.mxu0 0.0
        %299 = vmatpush1.xpose.msra.mxu0 0.0
        %300 = vmatprep.subr.mxu0 0.0
        %301 = vmatpush1.xpose.msra.mxu0 0.0
        %302 = vmatprep.subr.mxu0 0.0
        %303 = vmatpush1.xpose.msra.mxu0 0.0
        %304 = vmatprep.subr.mxu0 0.0
        %305 = vmatpush1.xpose.msra.mxu0 0.0
        %306 = vmatprep.subr.mxu0 0.0
        %307 = vmatpush1.xpose.msra.mxu0 0.0
        %308 = vmatprep.subr.mxu0 0.0
        %309 = vmatpush1.xpose.msra.mxu0 0.0
        %310 = vmatprep.subr.mxu0 0.0
        %311 = vmatpush1.xpose.msra.mxu0 0.0
        %312 = vmatprep.subr.mxu0 0.0
        %313 = vmatpush1.xpose.msra.mxu0 0.0
        %314 = vmatprep.subr.mxu0 0.0
        %315 = vmatpush1.xpose.msra.mxu0 0.0
        %316 = vmatprep.subr.mxu0 0.0
        %317 = vmatpush1.xpose.msra.mxu0 0.0
        %318 = vmatprep.subr.mxu0 0.0
        %319 = vmatpush1.xpose.msra.mxu0 0.0
        %320 = vmatprep.subr.mxu0 0.0
        %321 = vmatpush1.xpose.msra.mxu0 0.0
        %322 = vmatprep.subr.mxu0 0.0
        %323 = vmatpush1.xpose.msra.mxu0 0.0
        %324 = vmatprep.subr.mxu0 0.0
        %325 = vmatpush1.xpose.msra.mxu0 0.0
        %326 = vmatprep.subr.mxu0 0.0
        %327 = vmatpush1.xpose.msra.mxu0 0.0
        %328 = vmatprep.subr.mxu0 0.0
        %329 = vmatpush1.xpose.msra.mxu0 0.0
        %330 = vmatprep.subr.mxu0 0.0
        %331 = vmatpush1.xpose.msra.mxu0 0.0
        %332 = vmatprep.subr.mxu0 0.0
        %333 = vmatpush1.xpose.msra.mxu0 0.0
        %334 = vmatprep.subr.mxu0 0.0
        %335 = vmatpush1.xpose.msra.mxu0 0.0
        %336 = vmatprep.subr.mxu0 0.0
        %337 = vmatpush1.xpose.msra.mxu0 0.0
        %338 = vmatprep.mubr.f32.mxu0 0.0
        %339 = vmatmul.mubr.f32.gmra.mrb[0].mxu0 %v194
        %v340 = vpop.f32.mrb[0].mxu0
        %v341 = vadd.f32 0.0, %v340
        %v342 = vpop.f32.mrb[0].mxu0
        %343 = vdwg.mxu0
        %v344 = vsub.f32 %v271, 1.0
        %v345 = vmul.f32 %v344, 2.0
        %v346 = vmul.f32 %v345, 1.442695
        %v347 = vpow.pop %v346
        %v348 = vsub.f32 %v341, 1.0
        %v349 = vmul.f32 %v348, 2.0
        %v350 = vmul.f32 %v349, 1.442695
        %v351 = vpow.pop %v350
        %v352 = vlaneseq
        %v353 = vand.u32 %v352, 127
        %v354 = vlaneseq
        %v355 = vshrl.u32 %v354, 7
        %v356 = vstv %s190
        %v357 = vadd.s32 %v355, %v356
        %vm358 = vcmp.eq.s32.totalorder %v353, %v357
        %v359 = vsel %vm358, 0.0, %v347
        %vm360 = vcmask 27648
        %v361 = vsel %vm360, %v359, 0.0
        %362 = vadd.xlane.f32.xlu0 %v361
        %v363 = vpop.xlane.xlu0 %362
        %v364 = vsel %vm360, %v351, 0.0
        %365 = vadd.xlane.f32.xlu0 %v364
        %v366 = vpop.xlane.xlu0 %365
        %v367 = vadd.f32 %v363, %v366
        %v368 = vmul.f32 %v194, %v199
        %vm369 = vcmask 1043456
        %v370 = vsel %vm369, %v368, 0.0
        %371 = vadd.xlane.f32.xlu0 %v370
        %v372 = vpop.xlane.xlu0 %371
        %v373 = vsub.f32 1.0, %v372
        %v374 = vmul.f32 %v373, 2.0
        %v375 = vlog2.pop %v367
        %v376 = vmul.f32 %v375, 0.6931472
        %v377 = vadd.f32 %v374, %v376
        %vm378 = vcmask 3072
        %v379 = vsel %vm378, %v377, 0.0
        %380 = vadd.xlane.f32.xlu0 %v379
        %v381 = vpop.xlane.xlu0 %380
        %v382 = vrot.slane %v381, 4
        %v383 = vadd.f32 %v381, %v382
        %v384 = vrot.slane %v383, 2
        %v385 = vadd.f32 %v383, %v384
        %v386 = vrot.slane %v385, 1
        %v387 = vadd.f32 %v385, %v386
        %s388 = vtos %v387
        %v389 = vld [vmem:[#allocation8] sm:$0x1]
        %v390 = vstv %s388
        %v391 = vadd.f32 %v389, %v390
        %vm392 = vcmask 0
        %393 = vst.msk [vmem:[#allocation8] sm:$0x1] %vm392, %v391
        %p394 = scmp.eq.s32.totalorder %s20, 1
        %p395 = pnand %p394, %p149
        %p396 = pneg %p395
        // Predicated region
        $region41: #{tpu_custom_call.1} parent=27 // pred_check
          _
        $region42: #{tpu_custom_call.1} parent=27 // pred_check_branch
          %398 = sbr.rel (%p395) target = $region44
        $region43: #{tpu_custom_call.1} parent=27 // pred_region
          %v399 = vld [vmem:[#allocation8] sm:$0x1]
          %v400 = vmul.f32 %v399, 0.125
          %401 = vst.msk [vmem:[#allocation8] sm:$0x1] %vm392, %v400
        $region44: #{tpu_custom_call.1} parent=27 // pred_fallthru
          _
        // Predicated region
        $region45: #{tpu_custom_call.1} parent=27 // pred_check
          %p402 = pneg %p83
        $region46: #{tpu_custom_call.1} parent=27 // pred_check_branch
          %404 = sbr.rel (%p402) target = $region48
        $region47: #{tpu_custom_call.1} parent=27 // pred_region
          %s406 = ssub.s32 16, 16
          %407 = vsyncadd [#allocation5], %s406
          %s409 = sshll.u32 [#allocation8], 4
          %s410 = int_to_ptr.vmem [resolvable:$true] %s409
          %412 = dma.vmem_to_hbm [thread:$0]  %s410, 16, %s2, [#allocation5]
        $region48: #{tpu_custom_call.1} parent=27 // pred_fallthru
          _
        // Predicated region
        $region49: #{tpu_custom_call.1} parent=27 // pred_check
          %p413 = pneg %p83
        $region50: #{tpu_custom_call.1} parent=27 // pred_check_branch
          %415 = sbr.rel (%p413) target = $region52
        $region51: #{tpu_custom_call.1} parent=27 // pred_region
          %416 = dma.done [#allocation5], 16
        $region52: #{tpu_custom_call.1} parent=27 // pred_fallthru
          _
      $region28: #{tpu_custom_call.1} parent=5 // pred_fallthru
        _
      %p417 = scmp.le.s32.totalorder 2, %s11
      // Predicated region
      $region53: #{tpu_custom_call.1} parent=5 // pred_check
        %p418 = pneg %p417
      $region54: #{tpu_custom_call.1} parent=5 // pred_check_branch
        %420 = sbr.rel (%p418) target = $region56
      $region55: #{tpu_custom_call.1} parent=5 // pred_region
        %s421 = ssub.s32 %s11, 2
      $region56: #{tpu_custom_call.1} parent=5 // pred_fallthru
        _
    $region6: #{tpu_custom_call.1} parent=1 // loop_footer
      %s15 = sadd.s32 1, %s11
    $region7: #{tpu_custom_call.1} parent=1 // loop_footer_branch
      %10 = sbr.rel target = $region3
    $region8: #{tpu_custom_call.1} parent=1 // loop_exit
      _
    %422 = vsyncpa [#allocation4], 1
    %s423 = scalar_lea.sflag [#allocation4], 1
    %424 = vsyncpa %s423, 1
    %425 = vsyncpa [#allocation7], 1
    %426 = vsyncpa [#allocation5], 1
    %s427 = scalar_lea.sflag [#allocation5], 1
    %428 = vsyncpa %s427, 1

</llo_original>
